<compile_context>
chip_gen: v7x
topology: tpu7x:2x2x1
jax: 0.10.0
libtpu: 0.0.40
codegen_flags: <defaults>
</compile_context>

<pallas_src>
import functools

import numpy as np

import jax
import jax.numpy as jnp
from jax.experimental import pallas as pl
from jax.experimental.pallas import tpu as pltpu

_LANES = 128
_CHUNK_ROWS = 64          # 8 vregs per chunk: x(8) + 2 accs(16) + temps fit in vregs
_MAX_TILE_ROWS = 1024     # ~512 KiB per in/out tile; 2 MiB double-buffered footprint


def _round_up(v, m):
    return -(-v // m) * m


def _metanet_loss_kernel(x_ref, a_ref, c_ref, b2_ref, o_ref, *,
                         hidden, num_pos, chunk_rows):
    # x_ref : (TILE_ROWS, 128) f32 VMEM   (lane-dense batch of scalar inputs)
    # a_ref : (H,) f32 SMEM   folded  w1[j] * w2[j]   (pos-w2 units first)
    # c_ref : (H,) f32 SMEM   folded  b1[j] * w2[j]
    # b2_ref: (1,) f32 SMEM
    # o_ref : (TILE_ROWS, 128) f32 VMEM

    # Hoist every SMEM scalar read out of the chunk loop (issued once per tile).
    a = [a_ref[j] for j in range(hidden)]
    c = [c_ref[j] for j in range(hidden)]
    b2 = b2_ref[0]

    n_chunks = x_ref.shape[0] // chunk_rows  # static

    @pl.loop(0, n_chunks)
    def _(ci):
        r0 = pl.multiple_of(ci * chunk_rows, chunk_rows)
        x = x_ref[pl.ds(r0, chunk_rows), :]          # (chunk_rows, 128), vreg-resident

        # Two partial accumulators -> no single H-long dependent add chain.
        accs = [jnp.zeros_like(x), jnp.zeros_like(x)]

        # w2 >= 0 group:  relu(w1*x + b1) * w2 == max(a*x + c, 0)
        for j in range(num_pos):
            accs[j & 1] = accs[j & 1] + jnp.maximum(x * a[j] + c[j], 0.0)
        # w2 < 0 group:   relu(w1*x + b1) * w2 == min(a*x + c, 0)
        for j in range(num_pos, hidden):
            accs[j & 1] = accs[j & 1] + jnp.minimum(x * a[j] + c[j], 0.0)

        z = (accs[0] + accs[1]) + b2

        # sigmoid(z) = 1 / (1 + exp(-z)); exp + approx reciprocal run on the
        # otherwise-idle EUP slot; one Newton step restores ~f32 accuracy.
        e = jnp.exp(-z)
        d = 1.0 + e
        r = pl.reciprocal(d, approx=True)
        r = r * (2.0 - d * r)

        o_ref[pl.ds(r0, chunk_rows), :] = r          # full-lane unmasked store


def metanet_loss(x, w1, b1, w2, b2, *,
                 max_tile_rows=_MAX_TILE_ROWS, chunk_rows=_CHUNK_ROWS):
    """x: (N, 1) f32; w1: (1, H); b1: (H,); w2: (H, 1); b2: (1,). Returns (N, 1) f32."""
    n, in_features = x.shape
    assert in_features == 1, "MetaNetLoss kernel requires input feature dim == 1 (Linear(1, H))"
    hidden = w1.shape[1]
    assert w1.shape == (1, hidden) and b1.shape == (hidden,)
    assert w2.shape == (hidden, 1) and b2.shape == (1,)

    # ---- fold the output layer into layer 1 (requires concrete params) -----
    w1f = jnp.asarray(w1, jnp.float32).reshape(hidden)
    b1f = jnp.asarray(b1, jnp.float32).reshape(hidden)
    w2f = jnp.asarray(w2, jnp.float32).reshape(hidden)
    b2f = jnp.asarray(b2, jnp.float32).reshape(1)

    w2_host = np.asarray(jax.device_get(w2f))            # concrete values (eager call)
    order = np.argsort(w2_host < 0, kind="stable")        # w2 >= 0 units first (stable)
    num_pos = int((w2_host >= 0).sum())
    a = (w1f * w2f)[order]                                 # (H,) folded weights
    c = (b1f * w2f)[order]                                 # (H,) folded biases

    # ---- lane-dense tiling: (N, 1) -> (padded_rows, 128) --------------------
    rows = _round_up(n, _LANES) // _LANES                 # ceil(N / 128)
    # Aim for >= 2 row tiles (v7x megacore) while capping the tile size.
    tr = min(max_tile_rows, max(8, _round_up(-(-rows // 2), 8)))
    if tr >= chunk_rows:
        cr = chunk_rows
        tr = (tr // cr) * cr                               # tile a multiple of the chunk
    else:
        cr = tr                                            # single chunk per (small) tile
    padded_rows = _round_up(rows, tr)
    n_pad = padded_rows * _LANES

    x_flat = x.reshape(-1)
    if x_flat.dtype != jnp.float32:
        x_flat = x_flat.astype(jnp.float32)
    if n_pad != n:                                         # pad only when not aligned
        x_flat = jnp.pad(x_flat, (0, n_pad - n))
    x2d = x_flat.reshape(padded_rows, _LANES)

    kernel = functools.partial(_metanet_loss_kernel,
                               hidden=hidden, num_pos=num_pos, chunk_rows=cr)

    out2d = pl.pallas_call(
        kernel,
        out_shape=jax.ShapeDtypeStruct((padded_rows, _LANES), jnp.float32),
        grid_spec=pltpu.PrefetchScalarGridSpec(
            num_scalar_prefetch=0,
            grid=(padded_rows // tr,),
            in_specs=[
                pl.BlockSpec((tr, _LANES), lambda i: (i, 0)),              # x tile
                pl.BlockSpec(memory_space=pltpu.MemorySpace.SMEM),         # a = w1*w2
                pl.BlockSpec(memory_space=pltpu.MemorySpace.SMEM),         # c = b1*w2
                pl.BlockSpec(memory_space=pltpu.MemorySpace.SMEM),         # b2
            ],
            out_specs=pl.BlockSpec((tr, _LANES), lambda i: (i, 0)),
        ),
        compiler_params=pltpu.CompilerParams(
            dimension_semantics=("parallel",),       # shard row tiles across TCs (v7x)
            vmem_limit_bytes=32 * 1024 * 1024,       # tiles are <= ~512 KiB each
        ),
    )(x2d, a, c, b2f)

    # Drop padded rows/lanes (padding is never exposed).
    return out2d.reshape(n_pad, 1)[:n]


def metanet_loss_ref(x, w1, b1, w2, b2):
    h = jnp.maximum(x @ w1 + b1[None, :], 0.0)
    return jax.nn.sigmoid(h @ w2 + b2[None, :])


if __name__ == "__main__":
    key = jax.random.PRNGKey(0)
    k_x, k_w1, k_b1, k_w2, k_b2 = jax.random.split(key, 5)

    N = 8            # batch of per-sample losses
    HIDDEN = 32      # hidden_size (small for the example; module default is 100)
    # num_layers=1 (module default) => no "rest_hidden_layers".

    x = jax.random.normal(k_x, (N, 1), dtype=jnp.float32)

    # Deterministic parameter init (uniform, roughly matching nn.Linear's scale).
    w1 = jax.random.uniform(k_w1, (1, HIDDEN), minval=-1.0, maxval=1.0, dtype=jnp.float32)
    b1 = jax.random.uniform(k_b1, (HIDDEN,), minval=-1.0, maxval=1.0, dtype=jnp.float32)
    bound2 = 1.0 / (HIDDEN ** 0.5)
    w2 = jax.random.uniform(k_w2, (HIDDEN, 1), minval=-bound2, maxval=bound2, dtype=jnp.float32)
    b2 = jax.random.uniform(k_b2, (1,), minval=-bound2, maxval=bound2, dtype=jnp.float32)

    out = jax.block_until_ready(metanet_loss(x, w1, b1, w2, b2))
    ref = metanet_loss_ref(x, w1, b1, w2, b2)
    assert out.shape == (N, 1)
    assert jnp.allclose(out, ref, atol=1e-5, rtol=1e-5), (out, ref)

    # N not a multiple of 128 exercises the padding / slicing path.
    N2 = 300
    x2 = jax.random.normal(jax.random.PRNGKey(1), (N2, 1), dtype=jnp.float32)
    out2 = jax.block_until_ready(metanet_loss(x2, w1, b1, w2, b2))
    ref2 = metanet_loss_ref(x2, w1, b1, w2, b2)
    assert out2.shape == (N2, 1)
    assert jnp.allclose(out2, ref2, atol=1e-5, rtol=1e-5), (out2, ref2)

    # Larger N exercises the multi-tile grid and the in-kernel chunk loop.
    N3 = 40_000
    x3 = jax.random.normal(jax.random.PRNGKey(2), (N3, 1), dtype=jnp.float32)
    out3 = jax.block_until_ready(metanet_loss(x3, w1, b1, w2, b2))
    ref3 = metanet_loss_ref(x3, w1, b1, w2, b2)
    assert out3.shape == (N3, 1)
    assert jnp.allclose(out3, ref3, atol=1e-5, rtol=1e-5)

    print("KERNEL_OK")
</pallas_src>

<mosaic_0001>
module attributes {stable_mosaic.version = 11 : i64} {
  func.func @_metanet_loss_kernel(%arg0: i32, %arg1: memref<8x128xf32, #tpu.memory_space<vmem>>, %arg2: memref<32xf32, #tpu.memory_space<smem>>, %arg3: memref<32xf32, #tpu.memory_space<smem>>, %arg4: memref<1xf32, #tpu.memory_space<smem>>, %arg5: memref<8x128xf32, #tpu.memory_space<vmem>>) attributes {dimension_semantics = [#tpu.dimension_semantics<parallel>], iteration_bounds = array<i64: 1>, scalar_prefetch = 0 : i64, scratch_operands = 0 : i64, tpu.core_type = #tpu.core_type<tc>, window_params = [{transform_indices = @transform_0, window_bounds = array<i64: 8, 128>}, {transform_indices = @transform_1, window_bounds = array<i64: 32>}, {transform_indices = @transform_2, window_bounds = array<i64: 32>}, {transform_indices = @transform_3, window_bounds = array<i64: 1>}, {transform_indices = @transform_4, window_bounds = array<i64: 8, 128>}]} {
    %c0 = arith.constant 0 : index
    %0 = memref.load %arg2[%c0] : memref<32xf32, #tpu.memory_space<smem>>
    %c1 = arith.constant 1 : index
    %1 = memref.load %arg2[%c1] : memref<32xf32, #tpu.memory_space<smem>>
    %c2 = arith.constant 2 : index
    %2 = memref.load %arg2[%c2] : memref<32xf32, #tpu.memory_space<smem>>
    %c3 = arith.constant 3 : index
    %3 = memref.load %arg2[%c3] : memref<32xf32, #tpu.memory_space<smem>>
    %c4 = arith.constant 4 : index
    %4 = memref.load %arg2[%c4] : memref<32xf32, #tpu.memory_space<smem>>
    %c5 = arith.constant 5 : index
    %5 = memref.load %arg2[%c5] : memref<32xf32, #tpu.memory_space<smem>>
    %c6 = arith.constant 6 : index
    %6 = memref.load %arg2[%c6] : memref<32xf32, #tpu.memory_space<smem>>
    %c7 = arith.constant 7 : index
    %7 = memref.load %arg2[%c7] : memref<32xf32, #tpu.memory_space<smem>>
    %c8 = arith.constant 8 : index
    %8 = memref.load %arg2[%c8] : memref<32xf32, #tpu.memory_space<smem>>
    %c9 = arith.constant 9 : index
    %9 = memref.load %arg2[%c9] : memref<32xf32, #tpu.memory_space<smem>>
    %c10 = arith.constant 10 : index
    %10 = memref.load %arg2[%c10] : memref<32xf32, #tpu.memory_space<smem>>
    %c11 = arith.constant 11 : index
    %11 = memref.load %arg2[%c11] : memref<32xf32, #tpu.memory_space<smem>>
    %c12 = arith.constant 12 : index
    %12 = memref.load %arg2[%c12] : memref<32xf32, #tpu.memory_space<smem>>
    %c13 = arith.constant 13 : index
    %13 = memref.load %arg2[%c13] : memref<32xf32, #tpu.memory_space<smem>>
    %c14 = arith.constant 14 : index
    %14 = memref.load %arg2[%c14] : memref<32xf32, #tpu.memory_space<smem>>
    %c15 = arith.constant 15 : index
    %15 = memref.load %arg2[%c15] : memref<32xf32, #tpu.memory_space<smem>>
    %c16 = arith.constant 16 : index
    %16 = memref.load %arg2[%c16] : memref<32xf32, #tpu.memory_space<smem>>
    %c17 = arith.constant 17 : index
    %17 = memref.load %arg2[%c17] : memref<32xf32, #tpu.memory_space<smem>>
    %c18 = arith.constant 18 : index
    %18 = memref.load %arg2[%c18] : memref<32xf32, #tpu.memory_space<smem>>
    %c19 = arith.constant 19 : index
    %19 = memref.load %arg2[%c19] : memref<32xf32, #tpu.memory_space<smem>>
    %c20 = arith.constant 20 : index
    %20 = memref.load %arg2[%c20] : memref<32xf32, #tpu.memory_space<smem>>
    %c21 = arith.constant 21 : index
    %21 = memref.load %arg2[%c21] : memref<32xf32, #tpu.memory_space<smem>>
    %c22 = arith.constant 22 : index
    %22 = memref.load %arg2[%c22] : memref<32xf32, #tpu.memory_space<smem>>
    %c23 = arith.constant 23 : index
    %23 = memref.load %arg2[%c23] : memref<32xf32, #tpu.memory_space<smem>>
    %c24 = arith.constant 24 : index
    %24 = memref.load %arg2[%c24] : memref<32xf32, #tpu.memory_space<smem>>
    %c25 = arith.constant 25 : index
    %25 = memref.load %arg2[%c25] : memref<32xf32, #tpu.memory_space<smem>>
    %c26 = arith.constant 26 : index
    %26 = memref.load %arg2[%c26] : memref<32xf32, #tpu.memory_space<smem>>
    %c27 = arith.constant 27 : index
    %27 = memref.load %arg2[%c27] : memref<32xf32, #tpu.memory_space<smem>>
    %c28 = arith.constant 28 : index
    %28 = memref.load %arg2[%c28] : memref<32xf32, #tpu.memory_space<smem>>
    %c29 = arith.constant 29 : index
    %29 = memref.load %arg2[%c29] : memref<32xf32, #tpu.memory_space<smem>>
    %c30 = arith.constant 30 : index
    %30 = memref.load %arg2[%c30] : memref<32xf32, #tpu.memory_space<smem>>
    %c31 = arith.constant 31 : index
    %31 = memref.load %arg2[%c31] : memref<32xf32, #tpu.memory_space<smem>>
    %c0_0 = arith.constant 0 : index
    %32 = memref.load %arg3[%c0_0] : memref<32xf32, #tpu.memory_space<smem>>
    %c1_1 = arith.constant 1 : index
    %33 = memref.load %arg3[%c1_1] : memref<32xf32, #tpu.memory_space<smem>>
    %c2_2 = arith.constant 2 : index
    %34 = memref.load %arg3[%c2_2] : memref<32xf32, #tpu.memory_space<smem>>
    %c3_3 = arith.constant 3 : index
    %35 = memref.load %arg3[%c3_3] : memref<32xf32, #tpu.memory_space<smem>>
    %c4_4 = arith.constant 4 : index
    %36 = memref.load %arg3[%c4_4] : memref<32xf32, #tpu.memory_space<smem>>
    %c5_5 = arith.constant 5 : index
    %37 = memref.load %arg3[%c5_5] : memref<32xf32, #tpu.memory_space<smem>>
    %c6_6 = arith.constant 6 : index
    %38 = memref.load %arg3[%c6_6] : memref<32xf32, #tpu.memory_space<smem>>
    %c7_7 = arith.constant 7 : index
    %39 = memref.load %arg3[%c7_7] : memref<32xf32, #tpu.memory_space<smem>>
    %c8_8 = arith.constant 8 : index
    %40 = memref.load %arg3[%c8_8] : memref<32xf32, #tpu.memory_space<smem>>
    %c9_9 = arith.constant 9 : index
    %41 = memref.load %arg3[%c9_9] : memref<32xf32, #tpu.memory_space<smem>>
    %c10_10 = arith.constant 10 : index
    %42 = memref.load %arg3[%c10_10] : memref<32xf32, #tpu.memory_space<smem>>
    %c11_11 = arith.constant 11 : index
    %43 = memref.load %arg3[%c11_11] : memref<32xf32, #tpu.memory_space<smem>>
    %c12_12 = arith.constant 12 : index
    %44 = memref.load %arg3[%c12_12] : memref<32xf32, #tpu.memory_space<smem>>
    %c13_13 = arith.constant 13 : index
    %45 = memref.load %arg3[%c13_13] : memref<32xf32, #tpu.memory_space<smem>>
    %c14_14 = arith.constant 14 : index
    %46 = memref.load %arg3[%c14_14] : memref<32xf32, #tpu.memory_space<smem>>
    %c15_15 = arith.constant 15 : index
    %47 = memref.load %arg3[%c15_15] : memref<32xf32, #tpu.memory_space<smem>>
    %c16_16 = arith.constant 16 : index
    %48 = memref.load %arg3[%c16_16] : memref<32xf32, #tpu.memory_space<smem>>
    %c17_17 = arith.constant 17 : index
    %49 = memref.load %arg3[%c17_17] : memref<32xf32, #tpu.memory_space<smem>>
    %c18_18 = arith.constant 18 : index
    %50 = memref.load %arg3[%c18_18] : memref<32xf32, #tpu.memory_space<smem>>
    %c19_19 = arith.constant 19 : index
    %51 = memref.load %arg3[%c19_19] : memref<32xf32, #tpu.memory_space<smem>>
    %c20_20 = arith.constant 20 : index
    %52 = memref.load %arg3[%c20_20] : memref<32xf32, #tpu.memory_space<smem>>
    %c21_21 = arith.constant 21 : index
    %53 = memref.load %arg3[%c21_21] : memref<32xf32, #tpu.memory_space<smem>>
    %c22_22 = arith.constant 22 : index
    %54 = memref.load %arg3[%c22_22] : memref<32xf32, #tpu.memory_space<smem>>
    %c23_23 = arith.constant 23 : index
    %55 = memref.load %arg3[%c23_23] : memref<32xf32, #tpu.memory_space<smem>>
    %c24_24 = arith.constant 24 : index
    %56 = memref.load %arg3[%c24_24] : memref<32xf32, #tpu.memory_space<smem>>
    %c25_25 = arith.constant 25 : index
    %57 = memref.load %arg3[%c25_25] : memref<32xf32, #tpu.memory_space<smem>>
    %c26_26 = arith.constant 26 : index
    %58 = memref.load %arg3[%c26_26] : memref<32xf32, #tpu.memory_space<smem>>
    %c27_27 = arith.constant 27 : index
    %59 = memref.load %arg3[%c27_27] : memref<32xf32, #tpu.memory_space<smem>>
    %c28_28 = arith.constant 28 : index
    %60 = memref.load %arg3[%c28_28] : memref<32xf32, #tpu.memory_space<smem>>
    %c29_29 = arith.constant 29 : index
    %61 = memref.load %arg3[%c29_29] : memref<32xf32, #tpu.memory_space<smem>>
    %c30_30 = arith.constant 30 : index
    %62 = memref.load %arg3[%c30_30] : memref<32xf32, #tpu.memory_space<smem>>
    %c31_31 = arith.constant 31 : index
    %63 = memref.load %arg3[%c31_31] : memref<32xf32, #tpu.memory_space<smem>>
    %c0_32 = arith.constant 0 : index
    %64 = memref.load %arg4[%c0_32] : memref<1xf32, #tpu.memory_space<smem>>
    %c0_i32 = arith.constant 0 : i32
    %c1_i32 = arith.constant 1 : i32
    %65 = arith.muli %c0_i32, %c1_i32 : i32
    %c0_i32_33 = arith.constant 0 : i32
    %66 = arith.addi %c0_i32_33, %65 : i32
    %c8_i32 = arith.constant 8 : i32
    %67 = arith.muli %66, %c8_i32 : i32
    %68 = tpu.assume_multiple %67, 8 : i32
    %69 = arith.index_cast %68 : i32 to index
    %c0_34 = arith.constant 0 : index
    %70 = vector.load %arg1[%69, %c0_34] : memref<8x128xf32, #tpu.memory_space<vmem>>, vector<8x128xf32>
    %cst = arith.constant 0.000000e+00 : f32
    %71 = vector.broadcast %cst : f32 to vector<8x128xf32>
    %cst_35 = arith.constant 0.000000e+00 : f32
    %72 = vector.broadcast %cst_35 : f32 to vector<8x128xf32>
    %73 = vector.broadcast %0 : f32 to vector<8x128xf32>
    %74 = arith.mulf %70, %73 : vector<8x128xf32>
    %75 = vector.broadcast %32 : f32 to vector<8x128xf32>
    %76 = arith.addf %74, %75 : vector<8x128xf32>
    %cst_36 = arith.constant 0.000000e+00 : f32
    %77 = vector.broadcast %cst_36 : f32 to vector<8x128xf32>
    %78 = arith.maximumf %76, %77 : vector<8x128xf32>
    %79 = arith.addf %71, %78 : vector<8x128xf32>
    %80 = vector.broadcast %1 : f32 to vector<8x128xf32>
    %81 = arith.mulf %70, %80 : vector<8x128xf32>
    %82 = vector.broadcast %33 : f32 to vector<8x128xf32>
    %83 = arith.addf %81, %82 : vector<8x128xf32>
    %cst_37 = arith.constant 0.000000e+00 : f32
    %84 = vector.broadcast %cst_37 : f32 to vector<8x128xf32>
    %85 = arith.maximumf %83, %84 : vector<8x128xf32>
    %86 = arith.addf %72, %85 : vector<8x128xf32>
    %87 = vector.broadcast %2 : f32 to vector<8x128xf32>
    %88 = arith.mulf %70, %87 : vector<8x128xf32>
    %89 = vector.broadcast %34 : f32 to vector<8x128xf32>
    %90 = arith.addf %88, %89 : vector<8x128xf32>
    %cst_38 = arith.constant 0.000000e+00 : f32
    %91 = vector.broadcast %cst_38 : f32 to vector<8x128xf32>
    %92 = arith.maximumf %90, %91 : vector<8x128xf32>
    %93 = arith.addf %79, %92 : vector<8x128xf32>
    %94 = vector.broadcast %3 : f32 to vector<8x128xf32>
    %95 = arith.mulf %70, %94 : vector<8x128xf32>
    %96 = vector.broadcast %35 : f32 to vector<8x128xf32>
    %97 = arith.addf %95, %96 : vector<8x128xf32>
    %cst_39 = arith.constant 0.000000e+00 : f32
    %98 = vector.broadcast %cst_39 : f32 to vector<8x128xf32>
    %99 = arith.maximumf %97, %98 : vector<8x128xf32>
    %100 = arith.addf %86, %99 : vector<8x128xf32>
    %101 = vector.broadcast %4 : f32 to vector<8x128xf32>
    %102 = arith.mulf %70, %101 : vector<8x128xf32>
    %103 = vector.broadcast %36 : f32 to vector<8x128xf32>
    %104 = arith.addf %102, %103 : vector<8x128xf32>
    %cst_40 = arith.constant 0.000000e+00 : f32
    %105 = vector.broadcast %cst_40 : f32 to vector<8x128xf32>
    %106 = arith.maximumf %104, %105 : vector<8x128xf32>
    %107 = arith.addf %93, %106 : vector<8x128xf32>
    %108 = vector.broadcast %5 : f32 to vector<8x128xf32>
    %109 = arith.mulf %70, %108 : vector<8x128xf32>
    %110 = vector.broadcast %37 : f32 to vector<8x128xf32>
    %111 = arith.addf %109, %110 : vector<8x128xf32>
    %cst_41 = arith.constant 0.000000e+00 : f32
    %112 = vector.broadcast %cst_41 : f32 to vector<8x128xf32>
    %113 = arith.maximumf %111, %112 : vector<8x128xf32>
    %114 = arith.addf %100, %113 : vector<8x128xf32>
    %115 = vector.broadcast %6 : f32 to vector<8x128xf32>
    %116 = arith.mulf %70, %115 : vector<8x128xf32>
    %117 = vector.broadcast %38 : f32 to vector<8x128xf32>
    %118 = arith.addf %116, %117 : vector<8x128xf32>
    %cst_42 = arith.constant 0.000000e+00 : f32
    %119 = vector.broadcast %cst_42 : f32 to vector<8x128xf32>
    %120 = arith.maximumf %118, %119 : vector<8x128xf32>
    %121 = arith.addf %107, %120 : vector<8x128xf32>
    %122 = vector.broadcast %7 : f32 to vector<8x128xf32>
    %123 = arith.mulf %70, %122 : vector<8x128xf32>
    %124 = vector.broadcast %39 : f32 to vector<8x128xf32>
    %125 = arith.addf %123, %124 : vector<8x128xf32>
    %cst_43 = arith.constant 0.000000e+00 : f32
    %126 = vector.broadcast %cst_43 : f32 to vector<8x128xf32>
    %127 = arith.maximumf %125, %126 : vector<8x128xf32>
    %128 = arith.addf %114, %127 : vector<8x128xf32>
    %129 = vector.broadcast %8 : f32 to vector<8x128xf32>
    %130 = arith.mulf %70, %129 : vector<8x128xf32>
    %131 = vector.broadcast %40 : f32 to vector<8x128xf32>
    %132 = arith.addf %130, %131 : vector<8x128xf32>
    %cst_44 = arith.constant 0.000000e+00 : f32
    %133 = vector.broadcast %cst_44 : f32 to vector<8x128xf32>
    %134 = arith.maximumf %132, %133 : vector<8x128xf32>
    %135 = arith.addf %121, %134 : vector<8x128xf32>
    %136 = vector.broadcast %9 : f32 to vector<8x128xf32>
    %137 = arith.mulf %70, %136 : vector<8x128xf32>
    %138 = vector.broadcast %41 : f32 to vector<8x128xf32>
    %139 = arith.addf %137, %138 : vector<8x128xf32>
    %cst_45 = arith.constant 0.000000e+00 : f32
    %140 = vector.broadcast %cst_45 : f32 to vector<8x128xf32>
    %141 = arith.maximumf %139, %140 : vector<8x128xf32>
    %142 = arith.addf %128, %141 : vector<8x128xf32>
    %143 = vector.broadcast %10 : f32 to vector<8x128xf32>
    %144 = arith.mulf %70, %143 : vector<8x128xf32>
    %145 = vector.broadcast %42 : f32 to vector<8x128xf32>
    %146 = arith.addf %144, %145 : vector<8x128xf32>
    %cst_46 = arith.constant 0.000000e+00 : f32
    %147 = vector.broadcast %cst_46 : f32 to vector<8x128xf32>
    %148 = arith.maximumf %146, %147 : vector<8x128xf32>
    %149 = arith.addf %135, %148 : vector<8x128xf32>
    %150 = vector.broadcast %11 : f32 to vector<8x128xf32>
    %151 = arith.mulf %70, %150 : vector<8x128xf32>
    %152 = vector.broadcast %43 : f32 to vector<8x128xf32>
    %153 = arith.addf %151, %152 : vector<8x128xf32>
    %cst_47 = arith.constant 0.000000e+00 : f32
    %154 = vector.broadcast %cst_47 : f32 to vector<8x128xf32>
    %155 = arith.maximumf %153, %154 : vector<8x128xf32>
    %156 = arith.addf %142, %155 : vector<8x128xf32>
    %157 = vector.broadcast %12 : f32 to vector<8x128xf32>
    %158 = arith.mulf %70, %157 : vector<8x128xf32>
    %159 = vector.broadcast %44 : f32 to vector<8x128xf32>
    %160 = arith.addf %158, %159 : vector<8x128xf32>
    %cst_48 = arith.constant 0.000000e+00 : f32
    %161 = vector.broadcast %cst_48 : f32 to vector<8x128xf32>
    %162 = arith.maximumf %160, %161 : vector<8x128xf32>
    %163 = arith.addf %149, %162 : vector<8x128xf32>
    %164 = vector.broadcast %13 : f32 to vector<8x128xf32>
    %165 = arith.mulf %70, %164 : vector<8x128xf32>
    %166 = vector.broadcast %45 : f32 to vector<8x128xf32>
    %167 = arith.addf %165, %166 : vector<8x128xf32>
    %cst_49 = arith.constant 0.000000e+00 : f32
    %168 = vector.broadcast %cst_49 : f32 to vector<8x128xf32>
    %169 = arith.maximumf %167, %168 : vector<8x128xf32>
    %170 = arith.addf %156, %169 : vector<8x128xf32>
    %171 = vector.broadcast %14 : f32 to vector<8x128xf32>
    %172 = arith.mulf %70, %171 : vector<8x128xf32>
    %173 = vector.broadcast %46 : f32 to vector<8x128xf32>
    %174 = arith.addf %172, %173 : vector<8x128xf32>
    %cst_50 = arith.constant 0.000000e+00 : f32
    %175 = vector.broadcast %cst_50 : f32 to vector<8x128xf32>
    %176 = arith.maximumf %174, %175 : vector<8x128xf32>
    %177 = arith.addf %163, %176 : vector<8x128xf32>
    %178 = vector.broadcast %15 : f32 to vector<8x128xf32>
    %179 = arith.mulf %70, %178 : vector<8x128xf32>
    %180 = vector.broadcast %47 : f32 to vector<8x128xf32>
    %181 = arith.addf %179, %180 : vector<8x128xf32>
    %cst_51 = arith.constant 0.000000e+00 : f32
    %182 = vector.broadcast %cst_51 : f32 to vector<8x128xf32>
    %183 = arith.minimumf %181, %182 : vector<8x128xf32>
    %184 = arith.addf %170, %183 : vector<8x128xf32>
    %185 = vector.broadcast %16 : f32 to vector<8x128xf32>
    %186 = arith.mulf %70, %185 : vector<8x128xf32>
    %187 = vector.broadcast %48 : f32 to vector<8x128xf32>
    %188 = arith.addf %186, %187 : vector<8x128xf32>
    %cst_52 = arith.constant 0.000000e+00 : f32
    %189 = vector.broadcast %cst_52 : f32 to vector<8x128xf32>
    %190 = arith.minimumf %188, %189 : vector<8x128xf32>
    %191 = arith.addf %177, %190 : vector<8x128xf32>
    %192 = vector.broadcast %17 : f32 to vector<8x128xf32>
    %193 = arith.mulf %70, %192 : vector<8x128xf32>
    %194 = vector.broadcast %49 : f32 to vector<8x128xf32>
    %195 = arith.addf %193, %194 : vector<8x128xf32>
    %cst_53 = arith.constant 0.000000e+00 : f32
    %196 = vector.broadcast %cst_53 : f32 to vector<8x128xf32>
    %197 = arith.minimumf %195, %196 : vector<8x128xf32>
    %198 = arith.addf %184, %197 : vector<8x128xf32>
    %199 = vector.broadcast %18 : f32 to vector<8x128xf32>
    %200 = arith.mulf %70, %199 : vector<8x128xf32>
    %201 = vector.broadcast %50 : f32 to vector<8x128xf32>
    %202 = arith.addf %200, %201 : vector<8x128xf32>
    %cst_54 = arith.constant 0.000000e+00 : f32
    %203 = vector.broadcast %cst_54 : f32 to vector<8x128xf32>
    %204 = arith.minimumf %202, %203 : vector<8x128xf32>
    %205 = arith.addf %191, %204 : vector<8x128xf32>
    %206 = vector.broadcast %19 : f32 to vector<8x128xf32>
    %207 = arith.mulf %70, %206 : vector<8x128xf32>
    %208 = vector.broadcast %51 : f32 to vector<8x128xf32>
    %209 = arith.addf %207, %208 : vector<8x128xf32>
    %cst_55 = arith.constant 0.000000e+00 : f32
    %210 = vector.broadcast %cst_55 : f32 to vector<8x128xf32>
    %211 = arith.minimumf %209, %210 : vector<8x128xf32>
    %212 = arith.addf %198, %211 : vector<8x128xf32>
    %213 = vector.broadcast %20 : f32 to vector<8x128xf32>
    %214 = arith.mulf %70, %213 : vector<8x128xf32>
    %215 = vector.broadcast %52 : f32 to vector<8x128xf32>
    %216 = arith.addf %214, %215 : vector<8x128xf32>
    %cst_56 = arith.constant 0.000000e+00 : f32
    %217 = vector.broadcast %cst_56 : f32 to vector<8x128xf32>
    %218 = arith.minimumf %216, %217 : vector<8x128xf32>
    %219 = arith.addf %205, %218 : vector<8x128xf32>
    %220 = vector.broadcast %21 : f32 to vector<8x128xf32>
    %221 = arith.mulf %70, %220 : vector<8x128xf32>
    %222 = vector.broadcast %53 : f32 to vector<8x128xf32>
    %223 = arith.addf %221, %222 : vector<8x128xf32>
    %cst_57 = arith.constant 0.000000e+00 : f32
    %224 = vector.broadcast %cst_57 : f32 to vector<8x128xf32>
    %225 = arith.minimumf %223, %224 : vector<8x128xf32>
    %226 = arith.addf %212, %225 : vector<8x128xf32>
    %227 = vector.broadcast %22 : f32 to vector<8x128xf32>
    %228 = arith.mulf %70, %227 : vector<8x128xf32>
    %229 = vector.broadcast %54 : f32 to vector<8x128xf32>
    %230 = arith.addf %228, %229 : vector<8x128xf32>
    %cst_58 = arith.constant 0.000000e+00 : f32
    %231 = vector.broadcast %cst_58 : f32 to vector<8x128xf32>
    %232 = arith.minimumf %230, %231 : vector<8x128xf32>
    %233 = arith.addf %219, %232 : vector<8x128xf32>
    %234 = vector.broadcast %23 : f32 to vector<8x128xf32>
    %235 = arith.mulf %70, %234 : vector<8x128xf32>
    %236 = vector.broadcast %55 : f32 to vector<8x128xf32>
    %237 = arith.addf %235, %236 : vector<8x128xf32>
    %cst_59 = arith.constant 0.000000e+00 : f32
    %238 = vector.broadcast %cst_59 : f32 to vector<8x128xf32>
    %239 = arith.minimumf %237, %238 : vector<8x128xf32>
    %240 = arith.addf %226, %239 : vector<8x128xf32>
    %241 = vector.broadcast %24 : f32 to vector<8x128xf32>
    %242 = arith.mulf %70, %241 : vector<8x128xf32>
    %243 = vector.broadcast %56 : f32 to vector<8x128xf32>
    %244 = arith.addf %242, %243 : vector<8x128xf32>
    %cst_60 = arith.constant 0.000000e+00 : f32
    %245 = vector.broadcast %cst_60 : f32 to vector<8x128xf32>
    %246 = arith.minimumf %244, %245 : vector<8x128xf32>
    %247 = arith.addf %233, %246 : vector<8x128xf32>
    %248 = vector.broadcast %25 : f32 to vector<8x128xf32>
    %249 = arith.mulf %70, %248 : vector<8x128xf32>
    %250 = vector.broadcast %57 : f32 to vector<8x128xf32>
    %251 = arith.addf %249, %250 : vector<8x128xf32>
    %cst_61 = arith.constant 0.000000e+00 : f32
    %252 = vector.broadcast %cst_61 : f32 to vector<8x128xf32>
    %253 = arith.minimumf %251, %252 : vector<8x128xf32>
    %254 = arith.addf %240, %253 : vector<8x128xf32>
    %255 = vector.broadcast %26 : f32 to vector<8x128xf32>
    %256 = arith.mulf %70, %255 : vector<8x128xf32>
    %257 = vector.broadcast %58 : f32 to vector<8x128xf32>
    %258 = arith.addf %256, %257 : vector<8x128xf32>
    %cst_62 = arith.constant 0.000000e+00 : f32
    %259 = vector.broadcast %cst_62 : f32 to vector<8x128xf32>
    %260 = arith.minimumf %258, %259 : vector<8x128xf32>
    %261 = arith.addf %247, %260 : vector<8x128xf32>
    %262 = vector.broadcast %27 : f32 to vector<8x128xf32>
    %263 = arith.mulf %70, %262 : vector<8x128xf32>
    %264 = vector.broadcast %59 : f32 to vector<8x128xf32>
    %265 = arith.addf %263, %264 : vector<8x128xf32>
    %cst_63 = arith.constant 0.000000e+00 : f32
    %266 = vector.broadcast %cst_63 : f32 to vector<8x128xf32>
    %267 = arith.minimumf %265, %266 : vector<8x128xf32>
    %268 = arith.addf %254, %267 : vector<8x128xf32>
    %269 = vector.broadcast %28 : f32 to vector<8x128xf32>
    %270 = arith.mulf %70, %269 : vector<8x128xf32>
    %271 = vector.broadcast %60 : f32 to vector<8x128xf32>
    %272 = arith.addf %270, %271 : vector<8x128xf32>
    %cst_64 = arith.constant 0.000000e+00 : f32
    %273 = vector.broadcast %cst_64 : f32 to vector<8x128xf32>
    %274 = arith.minimumf %272, %273 : vector<8x128xf32>
    %275 = arith.addf %261, %274 : vector<8x128xf32>
    %276 = vector.broadcast %29 : f32 to vector<8x128xf32>
    %277 = arith.mulf %70, %276 : vector<8x128xf32>
    %278 = vector.broadcast %61 : f32 to vector<8x128xf32>
    %279 = arith.addf %277, %278 : vector<8x128xf32>
    %cst_65 = arith.constant 0.000000e+00 : f32
    %280 = vector.broadcast %cst_65 : f32 to vector<8x128xf32>
    %281 = arith.minimumf %279, %280 : vector<8x128xf32>
    %282 = arith.addf %268, %281 : vector<8x128xf32>
    %283 = vector.broadcast %30 : f32 to vector<8x128xf32>
    %284 = arith.mulf %70, %283 : vector<8x128xf32>
    %285 = vector.broadcast %62 : f32 to vector<8x128xf32>
    %286 = arith.addf %284, %285 : vector<8x128xf32>
    %cst_66 = arith.constant 0.000000e+00 : f32
    %287 = vector.broadcast %cst_66 : f32 to vector<8x128xf32>
    %288 = arith.minimumf %286, %287 : vector<8x128xf32>
    %289 = arith.addf %275, %288 : vector<8x128xf32>
    %290 = vector.broadcast %31 : f32 to vector<8x128xf32>
    %291 = arith.mulf %70, %290 : vector<8x128xf32>
    %292 = vector.broadcast %63 : f32 to vector<8x128xf32>
    %293 = arith.addf %291, %292 : vector<8x128xf32>
    %cst_67 = arith.constant 0.000000e+00 : f32
    %294 = vector.broadcast %cst_67 : f32 to vector<8x128xf32>
    %295 = arith.minimumf %293, %294 : vector<8x128xf32>
    %296 = arith.addf %282, %295 : vector<8x128xf32>
    %297 = arith.addf %289, %296 : vector<8x128xf32>
    %298 = vector.broadcast %64 : f32 to vector<8x128xf32>
    %299 = arith.addf %297, %298 : vector<8x128xf32>
    %cst_68 = arith.constant 0.000000e+00 : f32
    %300 = vector.broadcast %cst_68 : f32 to vector<8x128xf32>
    %301 = arith.subf %300, %299 : vector<8x128xf32>
    %302 = math.exp %301 : vector<8x128xf32>
    %cst_69 = arith.constant 1.000000e+00 : f32
    %303 = vector.broadcast %cst_69 : f32 to vector<8x128xf32>
    %304 = arith.addf %303, %302 : vector<8x128xf32>
    %305 = tpu.reciprocal %304 {approx = true} : vector<8x128xf32> -> vector<8x128xf32>
    %306 = arith.mulf %304, %305 : vector<8x128xf32>
    %cst_70 = arith.constant 2.000000e+00 : f32
    %307 = vector.broadcast %cst_70 : f32 to vector<8x128xf32>
    %308 = arith.subf %307, %306 : vector<8x128xf32>
    %309 = arith.mulf %305, %308 : vector<8x128xf32>
    %310 = arith.index_cast %68 : i32 to index
    %c0_71 = arith.constant 0 : index
    %311 = vector.load %arg5[%310, %c0_71] : memref<8x128xf32, #tpu.memory_space<vmem>>, vector<8x128xf32>
    tpu.vector_store %arg5[%310, %c0_71], %309 {strides = array<i32>} : memref<8x128xf32, #tpu.memory_space<vmem>>, vector<8x128xf32>,
    %c1_i32_72 = arith.constant 1 : i32
    return
  }
  func.func @transform_0(%arg0: i32) -> (i32, i32) {
    %c0_i32 = arith.constant 0 : i32
    %c0_i32_0 = arith.constant 0 : i32
    return %arg0, %c0_i32 : i32, i32
  }
  func.func @transform_1(%arg0: i32) -> i32 {
    %c0_i32 = arith.constant 0 : i32
    %c0_i32_0 = arith.constant 0 : i32
    return %c0_i32 : i32
  }
  func.func @transform_2(%arg0: i32) -> i32 {
    %c0_i32 = arith.constant 0 : i32
    %c0_i32_0 = arith.constant 0 : i32
    return %c0_i32 : i32
  }
  func.func @transform_3(%arg0: i32) -> i32 {
    %c0_i32 = arith.constant 0 : i32
    %c0_i32_0 = arith.constant 0 : i32
    return %c0_i32 : i32
  }
  func.func @transform_4(%arg0: i32) -> (i32, i32) {
    %c0_i32 = arith.constant 0 : i32
    %c0_i32_0 = arith.constant 0 : i32
    return %arg0, %c0_i32 : i32, i32
  }
}

</mosaic_0001>

<llo_original>
// kernel: tpu_custom_call.1
$region0: #{tpu_custom_call.1}
  #allocation0 [shape = 'u32[]', space=smem, size = 0x4, offset = 0x4, fixed_abs, tag = 'smem constant byte address 0x4 - core index']
  #allocation1 [shape = 'u32[144,128]{1,0:T(1,128)}', space=vmem, size = 0x12000, scoped, tag = 'internal scratch']
  #allocation2 [shape = 'f32[1]{0:T(128)S(6)}', space=smem, size = 0x200, scoped, tag = 'scoped memory for tpu_custom_call.1']
  %s0 = inlined_call_operand.hbm [shape: f32[8,128], index: 0, kind: input, shape index: {}]
  %s1 = inlined_call_operand.vmem [shape: f32[32], index: 1, kind: input, shape index: {}]
  %s2 = inlined_call_operand.vmem [shape: f32[32], index: 2, kind: input, shape index: {}]
  %s3 = inlined_call_operand.<no memory space> [shape: f32[1], index: 3, kind: input, shape index: {}]
  %s4 = inlined_call_operand.hbm [shape: f32[8,128], index: 4, kind: output, shape index: {}]
  %s5 = sld [smem:[#allocation0]]
  $region38: #{tpu_custom_call.1} parent=0
    _
  %s7 = ssub.s32 1, %s5
  %s8 = scalar_select 0, %s7, %s5
  %9 = sst [smem:[#allocation2]] %s3
  $region1: #{tpu_custom_call.1} parent=0
    #allocation3 [shape = 'u8[4096]{0}', space=vmem, size = 0x1000, scoped, tag = 'input window, operand 0, single buffered']
    #allocation4 [shape = 's32[1]{0}', space=sflag, size = 0x4, scoped, tag = 'scoped memory for tpu_custom_call.1']
    #allocation5 [shape = 's32[1]{0}', space=sflag, size = 0x4, scoped, tag = 'scoped memory for tpu_custom_call.1']
    #allocation6 [shape = 's32[1]{0}', space=sflag, size = 0x4, scoped, tag = 'scoped memory for tpu_custom_call.1']
    #allocation7 [shape = 'u8[512]{0}', space=smem, size = 0x200, scoped, tag = 'input window, operand 1, single buffered']
    #allocation8 [shape = 'u8[512]{0}', space=smem, size = 0x200, scoped, tag = 'input window, operand 2, single buffered']
    #allocation9 [shape = 's32[1]{0}', space=sflag, size = 0x4, scoped, tag = 'scoped memory for tpu_custom_call.1']
    #allocation10 [shape = 'u8[4096]{0}', space=vmem, size = 0x1000, scoped, tag = 'output window, operand 0, single buffered']
    %10 = vsyncpa [#allocation4], 0
    %11 = vsyncpa [#allocation6], 0
    %12 = vsyncpa [#allocation9], 0
    %13 = vsyncpa [#allocation5], 0
    // Predicated region
    $region2: #{tpu_custom_call.1} parent=1 // pred_check
      _
    $region3: #{tpu_custom_call.1} parent=1 // pred_check_branch
      %15 = sbr.rel (0) target = $region5
    $region4: #{tpu_custom_call.1} parent=1 // pred_region
      %s17 = ssub.s32 128, 128
      %18 = vsyncadd [#allocation4], %s17
      %s20 = sshll.u32 [#allocation3], 4
      %s21 = int_to_ptr.vmem [resolvable:$true] %s20
      %23 = dma.hbm_to_vmem [thread:$0]  %s0, 128, %s21, [#allocation4]
    $region5: #{tpu_custom_call.1} parent=1 // pred_fallthru
      _
    // Predicated region
    $region6: #{tpu_custom_call.1} parent=1 // pred_check
      _
    $region7: #{tpu_custom_call.1} parent=1 // pred_check_branch
      %25 = sbr.rel (0) target = $region9
    $region8: #{tpu_custom_call.1} parent=1 // pred_region
      %s27 = ssub.s32 16, 16
      %28 = vsyncadd [#allocation6], %s27
      %s30 = sshll.u32 %s1, 4
      %s31 = int_to_ptr.vmem [resolvable:$true] %s30
      %33 = dma.vmem_to_smem %s31, 16, [#allocation7], [#allocation6]
    $region9: #{tpu_custom_call.1} parent=1 // pred_fallthru
      _
    // Predicated region
    $region10: #{tpu_custom_call.1} parent=1 // pred_check
      _
    $region11: #{tpu_custom_call.1} parent=1 // pred_check_branch
      %35 = sbr.rel (0) target = $region13
    $region12: #{tpu_custom_call.1} parent=1 // pred_region
      %s37 = ssub.s32 16, 16
      %38 = vsyncadd [#allocation9], %s37
      %s40 = sshll.u32 %s2, 4
      %s41 = int_to_ptr.vmem [resolvable:$true] %s40
      %43 = dma.vmem_to_smem %s41, 16, [#allocation8], [#allocation9]
    $region13: #{tpu_custom_call.1} parent=1 // pred_fallthru
      _
    // Predicated region
    $region14: #{tpu_custom_call.1} parent=1 // pred_check
      _
    $region15: #{tpu_custom_call.1} parent=1 // pred_check_branch
      %45 = sbr.rel (0) target = $region17
    $region16: #{tpu_custom_call.1} parent=1 // pred_region
      _
    $region17: #{tpu_custom_call.1} parent=1 // pred_fallthru
      _
    // Predicated region
    $region18: #{tpu_custom_call.1} parent=1 // pred_check
      _
    $region19: #{tpu_custom_call.1} parent=1 // pred_check_branch
      %47 = sbr.rel (0) target = $region21
    $region20: #{tpu_custom_call.1} parent=1 // pred_region
      %48 = dma.done [#allocation4], 128
    $region21: #{tpu_custom_call.1} parent=1 // pred_fallthru
      _
    // Predicated region
    $region22: #{tpu_custom_call.1} parent=1 // pred_check
      _
    $region23: #{tpu_custom_call.1} parent=1 // pred_check_branch
      %50 = sbr.rel (0) target = $region25
    $region24: #{tpu_custom_call.1} parent=1 // pred_region
      %51 = dma.done [#allocation6], 16
    $region25: #{tpu_custom_call.1} parent=1 // pred_fallthru
      _
    // Predicated region
    $region26: #{tpu_custom_call.1} parent=1 // pred_check
      _
    $region27: #{tpu_custom_call.1} parent=1 // pred_check_branch
      %53 = sbr.rel (0) target = $region29
    $region28: #{tpu_custom_call.1} parent=1 // pred_region
      %54 = dma.done [#allocation9], 16
    $region29: #{tpu_custom_call.1} parent=1 // pred_fallthru
      _
    %55 = sfence
    %s56 = sld [smem:[#allocation7]]
    %s57 = sld [smem:[#allocation7 + $0x1]]
    %s58 = sld [smem:[#allocation7 + $0x2]]
    %s59 = sld [smem:[#allocation7 + $0x3]]
    %s60 = sld [smem:[#allocation7 + $0x4]]
    %s61 = sld [smem:[#allocation7 + $0x5]]
    %s62 = sld [smem:[#allocation7 + $0x6]]
    %s63 = sld [smem:[#allocation7 + $0x7]]
    %s64 = sld [smem:[#allocation7 + $0x8]]
    %s65 = sld [smem:[#allocation7 + $0x9]]
    %s66 = sld [smem:[#allocation7 + $0xa]]
    %s67 = sld [smem:[#allocation7 + $0xb]]
    %s68 = sld [smem:[#allocation7 + $0xc]]
    %s69 = sld [smem:[#allocation7 + $0xd]]
    %s70 = sld [smem:[#allocation7 + $0xe]]
    %s71 = sld [smem:[#allocation7 + $0xf]]
    %s72 = sld [smem:[#allocation7 + $0x10]]
    %s73 = sld [smem:[#allocation7 + $0x11]]
    %s74 = sld [smem:[#allocation7 + $0x12]]
    %s75 = sld [smem:[#allocation7 + $0x13]]
    %s76 = sld [smem:[#allocation7 + $0x14]]
    %s77 = sld [smem:[#allocation7 + $0x15]]
    %s78 = sld [smem:[#allocation7 + $0x16]]
    %s79 = sld [smem:[#allocation7 + $0x17]]
    %s80 = sld [smem:[#allocation7 + $0x18]]
    %s81 = sld [smem:[#allocation7 + $0x19]]
    %s82 = sld [smem:[#allocation7 + $0x1a]]
    %s83 = sld [smem:[#allocation7 + $0x1b]]
    %s84 = sld [smem:[#allocation7 + $0x1c]]
    %s85 = sld [smem:[#allocation7 + $0x1d]]
    %s86 = sld [smem:[#allocation7 + $0x1e]]
    %s87 = sld [smem:[#allocation7 + $0x1f]]
    %s88 = sld [smem:[#allocation8]]
    %s89 = sld [smem:[#allocation8 + $0x1]]
    %s90 = sld [smem:[#allocation8 + $0x2]]
    %s91 = sld [smem:[#allocation8 + $0x3]]
    %s92 = sld [smem:[#allocation8 + $0x4]]
    %s93 = sld [smem:[#allocation8 + $0x5]]
    %s94 = sld [smem:[#allocation8 + $0x6]]
    %s95 = sld [smem:[#allocation8 + $0x7]]
    %s96 = sld [smem:[#allocation8 + $0x8]]
    %s97 = sld [smem:[#allocation8 + $0x9]]
    %s98 = sld [smem:[#allocation8 + $0xa]]
    %s99 = sld [smem:[#allocation8 + $0xb]]
    %s100 = sld [smem:[#allocation8 + $0xc]]
    %s101 = sld [smem:[#allocation8 + $0xd]]
    %s102 = sld [smem:[#allocation8 + $0xe]]
    %s103 = sld [smem:[#allocation8 + $0xf]]
    %s104 = sld [smem:[#allocation8 + $0x10]]
    %s105 = sld [smem:[#allocation8 + $0x11]]
    %s106 = sld [smem:[#allocation8 + $0x12]]
    %s107 = sld [smem:[#allocation8 + $0x13]]
    %s108 = sld [smem:[#allocation8 + $0x14]]
    %s109 = sld [smem:[#allocation8 + $0x15]]
    %s110 = sld [smem:[#allocation8 + $0x16]]
    %s111 = sld [smem:[#allocation8 + $0x17]]
    %s112 = sld [smem:[#allocation8 + $0x18]]
    %s113 = sld [smem:[#allocation8 + $0x19]]
    %s114 = sld [smem:[#allocation8 + $0x1a]]
    %s115 = sld [smem:[#allocation8 + $0x1b]]
    %s116 = sld [smem:[#allocation8 + $0x1c]]
    %s117 = sld [smem:[#allocation8 + $0x1d]]
    %s118 = sld [smem:[#allocation8 + $0x1e]]
    %s119 = sld [smem:[#allocation8 + $0x1f]]
    %s120 = sld [smem:[#allocation2]]
    %v121 = vld [vmem:[#allocation3] sm:$0xff]
    %v122 = vstv %s56
    %v123 = vmul.f32 %v121, %v122
    %v124 = vstv %s88
    %v125 = vadd.f32 %v123, %v124
    %v126 = vmax.f32 %v125, 0.0
    %v127 = vadd.f32 %v126, 0.0
    %v128 = vstv %s57
    %v129 = vmul.f32 %v121, %v128
    %v130 = vstv %s89
    %v131 = vadd.f32 %v129, %v130
    %v132 = vmax.f32 %v131, 0.0
    %v133 = vadd.f32 %v132, 0.0
    %v134 = vstv %s58
    %v135 = vmul.f32 %v121, %v134
    %v136 = vstv %s90
    %v137 = vadd.f32 %v135, %v136
    %v138 = vmax.f32 %v137, 0.0
    %v139 = vadd.f32 %v127, %v138
    %v140 = vstv %s59
    %v141 = vmul.f32 %v121, %v140
    %v142 = vstv %s91
    %v143 = vadd.f32 %v141, %v142
    %v144 = vmax.f32 %v143, 0.0
    %v145 = vadd.f32 %v133, %v144
    %v146 = vstv %s60
    %v147 = vmul.f32 %v121, %v146
    %v148 = vstv %s92
    %v149 = vadd.f32 %v147, %v148
    %v150 = vmax.f32 %v149, 0.0
    %v151 = vadd.f32 %v139, %v150
    %v152 = vstv %s61
    %v153 = vmul.f32 %v121, %v152
    %v154 = vstv %s93
    %v155 = vadd.f32 %v153, %v154
    %v156 = vmax.f32 %v155, 0.0
    %v157 = vadd.f32 %v145, %v156
    %v158 = vstv %s62
    %v159 = vmul.f32 %v121, %v158
    %v160 = vstv %s94
    %v161 = vadd.f32 %v159, %v160
    %v162 = vmax.f32 %v161, 0.0
    %v163 = vadd.f32 %v151, %v162
    %v164 = vstv %s63
    %v165 = vmul.f32 %v121, %v164
    %v166 = vstv %s95
    %v167 = vadd.f32 %v165, %v166
    %v168 = vmax.f32 %v167, 0.0
    %v169 = vadd.f32 %v157, %v168
    %v170 = vstv %s64
    %v171 = vmul.f32 %v121, %v170
    %v172 = vstv %s96
    %v173 = vadd.f32 %v171, %v172
    %v174 = vmax.f32 %v173, 0.0
    %v175 = vadd.f32 %v163, %v174
    %v176 = vstv %s65
    %v177 = vmul.f32 %v121, %v176
    %v178 = vstv %s97
    %v179 = vadd.f32 %v177, %v178
    %v180 = vmax.f32 %v179, 0.0
    %v181 = vadd.f32 %v169, %v180
    %v182 = vstv %s66
    %v183 = vmul.f32 %v121, %v182
    %v184 = vstv %s98
    %v185 = vadd.f32 %v183, %v184
    %v186 = vmax.f32 %v185, 0.0
    %v187 = vadd.f32 %v175, %v186
    %v188 = vstv %s67
    %v189 = vmul.f32 %v121, %v188
    %v190 = vstv %s99
    %v191 = vadd.f32 %v189, %v190
    %v192 = vmax.f32 %v191, 0.0
    %v193 = vadd.f32 %v181, %v192
    %v194 = vstv %s68
    %v195 = vmul.f32 %v121, %v194
    %v196 = vstv %s100
    %v197 = vadd.f32 %v195, %v196
    %v198 = vmax.f32 %v197, 0.0
    %v199 = vadd.f32 %v187, %v198
    %v200 = vstv %s69
    %v201 = vmul.f32 %v121, %v200
    %v202 = vstv %s101
    %v203 = vadd.f32 %v201, %v202
    %v204 = vmax.f32 %v203, 0.0
    %v205 = vadd.f32 %v193, %v204
    %v206 = vstv %s70
    %v207 = vmul.f32 %v121, %v206
    %v208 = vstv %s102
    %v209 = vadd.f32 %v207, %v208
    %v210 = vmax.f32 %v209, 0.0
    %v211 = vadd.f32 %v199, %v210
    %v212 = vstv %s71
    %v213 = vmul.f32 %v121, %v212
    %v214 = vstv %s103
    %v215 = vadd.f32 %v213, %v214
    %v216 = vmin.f32 %v215, 0.0
    %v217 = vadd.f32 %v205, %v216
    %v218 = vstv %s72
    %v219 = vmul.f32 %v121, %v218
    %v220 = vstv %s104
    %v221 = vadd.f32 %v219, %v220
    %v222 = vmin.f32 %v221, 0.0
    %v223 = vadd.f32 %v211, %v222
    %v224 = vstv %s73
    %v225 = vmul.f32 %v121, %v224
    %v226 = vstv %s105
    %v227 = vadd.f32 %v225, %v226
    %v228 = vmin.f32 %v227, 0.0
    %v229 = vadd.f32 %v217, %v228
    %v230 = vstv %s74
    %v231 = vmul.f32 %v121, %v230
    %v232 = vstv %s106
    %v233 = vadd.f32 %v231, %v232
    %v234 = vmin.f32 %v233, 0.0
    %v235 = vadd.f32 %v223, %v234
    %v236 = vstv %s75
    %v237 = vmul.f32 %v121, %v236
    %v238 = vstv %s107
    %v239 = vadd.f32 %v237, %v238
    %v240 = vmin.f32 %v239, 0.0
    %v241 = vadd.f32 %v229, %v240
    %v242 = vstv %s76
    %v243 = vmul.f32 %v121, %v242
    %v244 = vstv %s108
    %v245 = vadd.f32 %v243, %v244
    %v246 = vmin.f32 %v245, 0.0
    %v247 = vadd.f32 %v235, %v246
    %v248 = vstv %s77
    %v249 = vmul.f32 %v121, %v248
    %v250 = vstv %s109
    %v251 = vadd.f32 %v249, %v250
    %v252 = vmin.f32 %v251, 0.0
    %v253 = vadd.f32 %v241, %v252
    %v254 = vstv %s78
    %v255 = vmul.f32 %v121, %v254
    %v256 = vstv %s110
    %v257 = vadd.f32 %v255, %v256
    %v258 = vmin.f32 %v257, 0.0
    %v259 = vadd.f32 %v247, %v258
    %v260 = vstv %s79
    %v261 = vmul.f32 %v121, %v260
    %v262 = vstv %s111
    %v263 = vadd.f32 %v261, %v262
    %v264 = vmin.f32 %v263, 0.0
    %v265 = vadd.f32 %v253, %v264
    %v266 = vstv %s80
    %v267 = vmul.f32 %v121, %v266
    %v268 = vstv %s112
    %v269 = vadd.f32 %v267, %v268
    %v270 = vmin.f32 %v269, 0.0
    %v271 = vadd.f32 %v259, %v270
    %v272 = vstv %s81
    %v273 = vmul.f32 %v121, %v272
    %v274 = vstv %s113
    %v275 = vadd.f32 %v273, %v274
    %v276 = vmin.f32 %v275, 0.0
    %v277 = vadd.f32 %v265, %v276
    %v278 = vstv %s82
    %v279 = vmul.f32 %v121, %v278
    %v280 = vstv %s114
    %v281 = vadd.f32 %v279, %v280
    %v282 = vmin.f32 %v281, 0.0
    %v283 = vadd.f32 %v271, %v282
    %v284 = vstv %s83
    %v285 = vmul.f32 %v121, %v284
    %v286 = vstv %s115
    %v287 = vadd.f32 %v285, %v286
    %v288 = vmin.f32 %v287, 0.0
    %v289 = vadd.f32 %v277, %v288
    %v290 = vstv %s84
    %v291 = vmul.f32 %v121, %v290
    %v292 = vstv %s116
    %v293 = vadd.f32 %v291, %v292
    %v294 = vmin.f32 %v293, 0.0
    %v295 = vadd.f32 %v283, %v294
    %v296 = vstv %s85
    %v297 = vmul.f32 %v121, %v296
    %v298 = vstv %s117
    %v299 = vadd.f32 %v297, %v298
    %v300 = vmin.f32 %v299, 0.0
    %v301 = vadd.f32 %v289, %v300
    %v302 = vstv %s86
    %v303 = vmul.f32 %v121, %v302
    %v304 = vstv %s118
    %v305 = vadd.f32 %v303, %v304
    %v306 = vmin.f32 %v305, 0.0
    %v307 = vadd.f32 %v295, %v306
    %v308 = vstv %s87
    %v309 = vmul.f32 %v121, %v308
    %v310 = vstv %s119
    %v311 = vadd.f32 %v309, %v310
    %v312 = vmin.f32 %v311, 0.0
    %v313 = vadd.f32 %v301, %v312
    %v314 = vadd.f32 %v307, %v313
    %v315 = vstv %s120
    %v316 = vadd.f32 %v314, %v315
    %v317 = vsub.f32 0.0, %v316
    %v318 = vmul.f32 %v317, 1.442695
    %v319 = vpow.pop %v318
    %v320 = vadd.f32 %v319, 1.0
    %v321 = vrcp.pop %v320
    %v322 = vmul.f32 %v320, %v321
    %v323 = vsub.f32 2.0, %v322
    %v324 = vmul.f32 %v321, %v323
    %325 = vst [vmem:[#allocation10] sm:$0xff] %v324
    // Predicated region
    $region30: #{tpu_custom_call.1} parent=1 // pred_check
      _
    $region31: #{tpu_custom_call.1} parent=1 // pred_check_branch
      %327 = sbr.rel (0) target = $region33
    $region32: #{tpu_custom_call.1} parent=1 // pred_region
      %s329 = ssub.s32 128, 128
      %330 = vsyncadd [#allocation5], %s329
      %s332 = sshll.u32 [#allocation10], 4
      %s333 = int_to_ptr.vmem [resolvable:$true] %s332
      %335 = dma.vmem_to_hbm [thread:$0]  %s333, 128, %s4, [#allocation5]
    $region33: #{tpu_custom_call.1} parent=1 // pred_fallthru
      _
    // Predicated region
    $region34: #{tpu_custom_call.1} parent=1 // pred_check
      _
    $region35: #{tpu_custom_call.1} parent=1 // pred_check_branch
      %337 = sbr.rel (0) target = $region37
    $region36: #{tpu_custom_call.1} parent=1 // pred_region
      %338 = dma.done [#allocation5], 128
    $region37: #{tpu_custom_call.1} parent=1 // pred_fallthru
      _
    %339 = vsyncpa [#allocation4], 1
    %340 = vsyncpa [#allocation5], 1
    %341 = vsyncpa [#allocation6], 1
    %342 = vsyncpa [#allocation9], 1

</llo_original>
